<compile_context>
chip_gen: v7x
topology: tpu7x:2x2x1
jax: 0.10.0
libtpu: 0.0.40
codegen_flags: <defaults>
</compile_context>

<pallas_src>
import math

import jax
import jax.numpy as jnp
from jax.experimental import pallas as pl
from jax.experimental.pallas import tpu as pltpu

PERIODS_SECONDS = {
    "day": 24 * 60 * 60,
    "week": 7 * 24 * 60 * 60,
    "month": 365 * 24 * 60 * 60 / 12,
    "year": 365 * 24 * 60 * 60,
}
PERIODS = list(PERIODS_SECONDS.keys())
NUM_FEATURES = len(PERIODS) * 2 + 1   # 9
KPAD = 16                             # features zero-padded to 16 for an aligned MXU contraction


def _round_up(n: int, m: int) -> int:
    return ((n + m - 1) // m) * m


def _make_kernel(mean: float, std: float, rows: int):
    """Kernel body; `rows` = tile_n // 128 sub-rows of 128 lane-packed timestamps."""
    mean = float(mean)
    inv_std = 1.0 / float(std)

    def kernel(x_ref, w_ref, b_ref, o_ref):
        # x_ref: (rows, 128) f32          lane = time index
        # w_ref: (D, KPAD) f32            PyTorch Linear weight, zero-padded along K
        # b_ref: (D, 1) f32
        # o_ref: (D, rows*128) f32        output transposed: lane-dense, unmasked stores
        x = x_ref[...]                                    # (rows, 128)
        w = w_ref[...]                                    # (D, KPAD)
        b = b_ref[...]                                    # (D, 1)

        # 9 features, fully lane-dense, in PyTorch concatenation order:
        # [sin_day, cos_day, sin_week, cos_week, sin_month, cos_month,
        #  sin_year, cos_year, time].  Divisions by constants folded to multiplies.
        feats = []
        for period in PERIODS:
            p = float(PERIODS_SECONDS[period])
            xp = jnp.mod(x, p)                            # torch `%` semantics
            y = (xp - 0.5 * p) * (math.pi / p)
            feats.append(jnp.sin(y))
            feats.append(jnp.cos(y))
        feats.append((x - mean) * inv_std)

        zpad = jnp.zeros((KPAD - NUM_FEATURES, 128), jnp.float32)

        # Per 128-lane row of times: stack features to (KPAD, 128), contract on the
        # MXU, then bias + ELU lane-dense and store a full 128-lane column slab.
        for r in range(rows):
            f_r = jnp.concatenate(
                [f[r:r + 1, :] for f in feats] + [zpad], axis=0)            # (KPAD, 128)
            z = jnp.dot(w, f_r, preferred_element_type=jnp.float32) + b     # (D, 128)
            # ELU(alpha=1). Clamp the exp argument so the discarded branch can't overflow.
            # TODO(synk): switch to jnp.expm1 once its Mosaic lowering is confirmed;
            # exp(z)-1 matches within f32 tolerance.
            o_ref[:, r * 128:(r + 1) * 128] = jnp.where(
                z > 0, z, jnp.exp(jnp.minimum(z, 0.0)) - 1.0)

    return kernel


def time_embedding(x, weight, bias, *, mean: float, std: float, max_tile_n: int = 2048):
    """x: (B, S) f32 seconds; weight: (D, 9) (PyTorch layout); bias: (D,)."""
    B, S = x.shape
    D = weight.shape[0]
    N = B * S

    # Tile selection: big lane-dense tiles (<=2048 times/step); pad N instead of asserting.
    tile_n = min(int(max_tile_n), _round_up(N, 128))
    n_pad = _round_up(N, tile_n)
    rows = tile_n // 128

    x_flat = jnp.asarray(x, jnp.float32).reshape(-1)
    if n_pad != N:
        x_flat = jnp.pad(x_flat, (0, n_pad - N))
    x2d = x_flat.reshape(n_pad // 128, 128)               # lane-dense time layout

    w_pad = jnp.zeros((D, KPAD), jnp.float32).at[:, :NUM_FEATURES].set(
        jnp.asarray(weight, jnp.float32))                 # (D, 16)
    b2d = jnp.asarray(bias, jnp.float32).reshape(D, 1)    # (D, 1)

    grid = (n_pad // tile_n,)
    out_t = pl.pallas_call(
        _make_kernel(mean, std, rows),
        out_shape=jax.ShapeDtypeStruct((D, n_pad), jnp.float32),
        grid_spec=pltpu.PrefetchScalarGridSpec(
            num_scalar_prefetch=0,
            grid=grid,
            in_specs=[
                pl.BlockSpec((rows, 128), lambda i: (i, 0)),
                pl.BlockSpec((D, KPAD), lambda i: (0, 0)),
                pl.BlockSpec((D, 1), lambda i: (0, 0)),
            ],
            out_specs=pl.BlockSpec((D, tile_n), lambda i: (0, i)),
        ),
        compiler_params=pltpu.CompilerParams(
            dimension_semantics=("parallel",)),            # shards across TCs on v7x
    )(x2d, w_pad, b2d)

    # (D, N) -> (B, S, D): one cheap XLA transpose; kernel-side stores stay unmasked.
    return out_t[:, :N].T.reshape(B, S, D)


def time_embedding_ref(x, weight, bias, *, mean: float, std: float):
    """Pure-JAX reference mirroring the PyTorch forward."""
    feats = []
    for period in PERIODS:
        p = float(PERIODS_SECONDS[period])
        xp = jnp.mod(x, p)
        y = (xp - 0.5 * p) * (math.pi / p)
        feats.append(jnp.stack([jnp.sin(y), jnp.cos(y)], axis=-1))
    time = (x - float(mean)) * (1.0 / float(std))
    cat = jnp.concatenate(feats + [time[..., None]], axis=-1)              # (..., 9)
    lin = cat @ jnp.asarray(weight, jnp.float32).T + jnp.asarray(bias, jnp.float32)
    return jnp.where(lin > 0, lin, jnp.exp(jnp.minimum(lin, 0.0)) - 1.0)


if __name__ == "__main__":
    mean = PERIODS_SECONDS["year"] / 2.0
    std = PERIODS_SECONDS["year"] / math.pi

    key = jax.random.PRNGKey(0)
    kx1, kw, kb, kx2 = jax.random.split(key, 4)

    D = 32
    bound = 1.0 / math.sqrt(NUM_FEATURES)
    weight = jax.random.uniform(kw, (D, NUM_FEATURES), jnp.float32, -bound, bound)
    bias = jax.random.uniform(kb, (D,), jnp.float32, -bound, bound)

    # Case 1: small shape (B=2, S=128) -> single grid step.
    B1, S1 = 2, 128
    x1 = jax.random.uniform(kx1, (B1, S1), jnp.float32,
                            0.0, 2.0 * PERIODS_SECONDS["year"])
    out1 = jax.block_until_ready(time_embedding(x1, weight, bias, mean=mean, std=std))
    ref1 = time_embedding_ref(x1, weight, bias, mean=mean, std=std)
    assert out1.shape == (B1, S1, D)
    assert jnp.allclose(out1, ref1, atol=1e-4, rtol=1e-4), "case 1 mismatch vs reference"

    # Case 2: larger shape (B=4, S=1024) -> multi-step grid (exercises tiling path).
    B2, S2 = 4, 1024
    x2 = jax.random.uniform(kx2, (B2, S2), jnp.float32,
                            0.0, 2.0 * PERIODS_SECONDS["year"])
    out2 = jax.block_until_ready(time_embedding(x2, weight, bias, mean=mean, std=std))
    ref2 = time_embedding_ref(x2, weight, bias, mean=mean, std=std)
    assert out2.shape == (B2, S2, D)
    assert jnp.allclose(out2, ref2, atol=1e-4, rtol=1e-4), "case 2 mismatch vs reference"

    print("KERNEL_OK")
</pallas_src>

<mosaic_0001>
module attributes {stable_mosaic.version = 11 : i64} {
  func.func @kernel(%arg0: i32, %arg1: memref<2x128xf32, #tpu.memory_space<vmem>>, %arg2: memref<32x16xf32, #tpu.memory_space<vmem>>, %arg3: memref<32x1xf32, #tpu.memory_space<vmem>>, %arg4: memref<32x256xf32, #tpu.memory_space<vmem>>) attributes {dimension_semantics = [#tpu.dimension_semantics<parallel>], iteration_bounds = array<i64: 1>, scalar_prefetch = 0 : i64, scratch_operands = 0 : i64, tpu.core_type = #tpu.core_type<tc>, window_params = [{transform_indices = @transform_0, window_bounds = array<i64: 2, 128>}, {pipeline_mode = #tpu.pipeline_mode<synchronous>, transform_indices = @transform_1, window_bounds = array<i64: 32, 16>}, {pipeline_mode = #tpu.pipeline_mode<synchronous>, transform_indices = @transform_2, window_bounds = array<i64: 32, 1>}, {transform_indices = @transform_3, window_bounds = array<i64: 32, 256>}]} {
    %c0 = arith.constant 0 : index
    %c0_0 = arith.constant 0 : index
    %0 = vector.load %arg1[%c0, %c0_0] : memref<2x128xf32, #tpu.memory_space<vmem>>, vector<2x128xf32>
    %c0_1 = arith.constant 0 : index
    %c0_2 = arith.constant 0 : index
    %1 = vector.load %arg2[%c0_1, %c0_2] : memref<32x16xf32, #tpu.memory_space<vmem>>, vector<32x16xf32>
    %c0_3 = arith.constant 0 : index
    %c0_4 = arith.constant 0 : index
    %2 = vector.load %arg3[%c0_3, %c0_4] : memref<32x1xf32, #tpu.memory_space<vmem>>, vector<32x1xf32>
    %cst = arith.constant 8.640000e+04 : f32
    %3 = vector.broadcast %cst : f32 to vector<2x128xf32>
    %4 = arith.remf %0, %3 : vector<2x128xf32>
    %cst_5 = arith.constant 0.000000e+00 : f32
    %5 = vector.broadcast %cst_5 : f32 to vector<2x128xf32>
    %6 = arith.cmpf one, %4, %5 : vector<2x128xf32>
    %cst_6 = arith.constant 0.000000e+00 : f32
    %7 = vector.broadcast %cst_6 : f32 to vector<2x128xf32>
    %8 = arith.cmpf olt, %4, %7 : vector<2x128xf32>
    %cst_7 = arith.constant 0.000000e+00 : f32
    %9 = arith.cmpf olt, %cst, %cst_7 : f32
    %10 = vector.broadcast %9 : i1 to vector<2x128xi1>
    %11 = vector.broadcast %10 : vector<2x128xi1> to vector<2x128xi1>
    %12 = arith.xori %8, %11 : vector<2x128xi1>
    %13 = arith.andi %12, %6 : vector<2x128xi1>
    %14 = vector.broadcast %cst : f32 to vector<2x128xf32>
    %15 = arith.addf %4, %14 : vector<2x128xf32>
    %16 = arith.select %13, %15, %4 : vector<2x128xi1>, vector<2x128xf32>
    %cst_8 = arith.constant 4.320000e+04 : f32
    %17 = vector.broadcast %cst_8 : f32 to vector<2x128xf32>
    %18 = arith.subf %16, %17 : vector<2x128xf32>
    %cst_9 = arith.constant 3.6361027E-5 : f32
    %19 = vector.broadcast %cst_9 : f32 to vector<2x128xf32>
    %20 = arith.mulf %18, %19 : vector<2x128xf32>
    %21 = math.sin %20 : vector<2x128xf32>
    %22 = math.cos %20 : vector<2x128xf32>
    %cst_10 = arith.constant 6.048000e+05 : f32
    %23 = vector.broadcast %cst_10 : f32 to vector<2x128xf32>
    %24 = arith.remf %0, %23 : vector<2x128xf32>
    %cst_11 = arith.constant 0.000000e+00 : f32
    %25 = vector.broadcast %cst_11 : f32 to vector<2x128xf32>
    %26 = arith.cmpf one, %24, %25 : vector<2x128xf32>
    %cst_12 = arith.constant 0.000000e+00 : f32
    %27 = vector.broadcast %cst_12 : f32 to vector<2x128xf32>
    %28 = arith.cmpf olt, %24, %27 : vector<2x128xf32>
    %cst_13 = arith.constant 0.000000e+00 : f32
    %29 = arith.cmpf olt, %cst_10, %cst_13 : f32
    %30 = vector.broadcast %29 : i1 to vector<2x128xi1>
    %31 = vector.broadcast %30 : vector<2x128xi1> to vector<2x128xi1>
    %32 = arith.xori %28, %31 : vector<2x128xi1>
    %33 = arith.andi %32, %26 : vector<2x128xi1>
    %34 = vector.broadcast %cst_10 : f32 to vector<2x128xf32>
    %35 = arith.addf %24, %34 : vector<2x128xf32>
    %36 = arith.select %33, %35, %24 : vector<2x128xi1>, vector<2x128xf32>
    %cst_14 = arith.constant 3.024000e+05 : f32
    %37 = vector.broadcast %cst_14 : f32 to vector<2x128xf32>
    %38 = arith.subf %36, %37 : vector<2x128xf32>
    %cst_15 = arith.constant 5.19443211E-6 : f32
    %39 = vector.broadcast %cst_15 : f32 to vector<2x128xf32>
    %40 = arith.mulf %38, %39 : vector<2x128xf32>
    %41 = math.sin %40 : vector<2x128xf32>
    %42 = math.cos %40 : vector<2x128xf32>
    %cst_16 = arith.constant 2.628000e+06 : f32
    %43 = vector.broadcast %cst_16 : f32 to vector<2x128xf32>
    %44 = arith.remf %0, %43 : vector<2x128xf32>
    %cst_17 = arith.constant 0.000000e+00 : f32
    %45 = vector.broadcast %cst_17 : f32 to vector<2x128xf32>
    %46 = arith.cmpf one, %44, %45 : vector<2x128xf32>
    %cst_18 = arith.constant 0.000000e+00 : f32
    %47 = vector.broadcast %cst_18 : f32 to vector<2x128xf32>
    %48 = arith.cmpf olt, %44, %47 : vector<2x128xf32>
    %cst_19 = arith.constant 0.000000e+00 : f32
    %49 = arith.cmpf olt, %cst_16, %cst_19 : f32
    %50 = vector.broadcast %49 : i1 to vector<2x128xi1>
    %51 = vector.broadcast %50 : vector<2x128xi1> to vector<2x128xi1>
    %52 = arith.xori %48, %51 : vector<2x128xi1>
    %53 = arith.andi %52, %46 : vector<2x128xi1>
    %54 = vector.broadcast %cst_16 : f32 to vector<2x128xf32>
    %55 = arith.addf %44, %54 : vector<2x128xf32>
    %56 = arith.select %53, %55, %44 : vector<2x128xi1>, vector<2x128xf32>
    %cst_20 = arith.constant 1.314000e+06 : f32
    %57 = vector.broadcast %cst_20 : f32 to vector<2x128xf32>
    %58 = arith.subf %56, %57 : vector<2x128xf32>
    %cst_21 = arith.constant 1.19543097E-6 : f32
    %59 = vector.broadcast %cst_21 : f32 to vector<2x128xf32>
    %60 = arith.mulf %58, %59 : vector<2x128xf32>
    %61 = math.sin %60 : vector<2x128xf32>
    %62 = math.cos %60 : vector<2x128xf32>
    %cst_22 = arith.constant 3.153600e+07 : f32
    %63 = vector.broadcast %cst_22 : f32 to vector<2x128xf32>
    %64 = arith.remf %0, %63 : vector<2x128xf32>
    %cst_23 = arith.constant 0.000000e+00 : f32
    %65 = vector.broadcast %cst_23 : f32 to vector<2x128xf32>
    %66 = arith.cmpf one, %64, %65 : vector<2x128xf32>
    %cst_24 = arith.constant 0.000000e+00 : f32
    %67 = vector.broadcast %cst_24 : f32 to vector<2x128xf32>
    %68 = arith.cmpf olt, %64, %67 : vector<2x128xf32>
    %cst_25 = arith.constant 0.000000e+00 : f32
    %69 = arith.cmpf olt, %cst_22, %cst_25 : f32
    %70 = vector.broadcast %69 : i1 to vector<2x128xi1>
    %71 = vector.broadcast %70 : vector<2x128xi1> to vector<2x128xi1>
    %72 = arith.xori %68, %71 : vector<2x128xi1>
    %73 = arith.andi %72, %66 : vector<2x128xi1>
    %74 = vector.broadcast %cst_22 : f32 to vector<2x128xf32>
    %75 = arith.addf %64, %74 : vector<2x128xf32>
    %76 = arith.select %73, %75, %64 : vector<2x128xi1>, vector<2x128xf32>
    %cst_26 = arith.constant 1.576800e+07 : f32
    %77 = vector.broadcast %cst_26 : f32 to vector<2x128xf32>
    %78 = arith.subf %76, %77 : vector<2x128xf32>
    %cst_27 = arith.constant 9.96192497E-8 : f32
    %79 = vector.broadcast %cst_27 : f32 to vector<2x128xf32>
    %80 = arith.mulf %78, %79 : vector<2x128xf32>
    %81 = math.sin %80 : vector<2x128xf32>
    %82 = math.cos %80 : vector<2x128xf32>
    %cst_28 = arith.constant 1.576800e+07 : f32
    %83 = vector.broadcast %cst_28 : f32 to vector<2x128xf32>
    %84 = arith.subf %0, %83 : vector<2x128xf32>
    %cst_29 = arith.constant 9.96192497E-8 : f32
    %85 = vector.broadcast %cst_29 : f32 to vector<2x128xf32>
    %86 = arith.mulf %84, %85 : vector<2x128xf32>
    %cst_30 = arith.constant 0.000000e+00 : f32
    %87 = vector.broadcast %cst_30 : f32 to vector<7x128xf32>
    %88 = vector.extract_strided_slice %21 {offsets = [0, 0], sizes = [1, 128], strides = [1, 1]} : vector<2x128xf32> to vector<1x128xf32>
    %89 = vector.extract_strided_slice %22 {offsets = [0, 0], sizes = [1, 128], strides = [1, 1]} : vector<2x128xf32> to vector<1x128xf32>
    %90 = vector.extract_strided_slice %41 {offsets = [0, 0], sizes = [1, 128], strides = [1, 1]} : vector<2x128xf32> to vector<1x128xf32>
    %91 = vector.extract_strided_slice %42 {offsets = [0, 0], sizes = [1, 128], strides = [1, 1]} : vector<2x128xf32> to vector<1x128xf32>
    %92 = vector.extract_strided_slice %61 {offsets = [0, 0], sizes = [1, 128], strides = [1, 1]} : vector<2x128xf32> to vector<1x128xf32>
    %93 = vector.extract_strided_slice %62 {offsets = [0, 0], sizes = [1, 128], strides = [1, 1]} : vector<2x128xf32> to vector<1x128xf32>
    %94 = vector.extract_strided_slice %81 {offsets = [0, 0], sizes = [1, 128], strides = [1, 1]} : vector<2x128xf32> to vector<1x128xf32>
    %95 = vector.extract_strided_slice %82 {offsets = [0, 0], sizes = [1, 128], strides = [1, 1]} : vector<2x128xf32> to vector<1x128xf32>
    %96 = vector.extract_strided_slice %86 {offsets = [0, 0], sizes = [1, 128], strides = [1, 1]} : vector<2x128xf32> to vector<1x128xf32>
    %97 = tpu.concatenate %88, %89, %90, %91, %92, %93, %94, %95, %96, %87 in 0 : vector<1x128xf32>, vector<1x128xf32>, vector<1x128xf32>, vector<1x128xf32>, vector<1x128xf32>, vector<1x128xf32>, vector<1x128xf32>, vector<1x128xf32>, vector<1x128xf32>, vector<7x128xf32> -> vector<16x128xf32>
    %cst_31 = arith.constant dense<0.000000e+00> : vector<32x128xf32>
    %98 = tpu.matmul %1, %97, %cst_31 {dimension_numbers = #tpu.dot_dimension_numbers<[1], [0], [0], [1], [0, 0, 1, 1], [], []>} : vector<32x16xf32>, vector<16x128xf32>, vector<32x128xf32> -> vector<32x128xf32>
    %99 = vector.broadcast %2 : vector<32x1xf32> to vector<32x128xf32>
    %100 = arith.addf %98, %99 : vector<32x128xf32>
    %cst_32 = arith.constant 0.000000e+00 : f32
    %101 = vector.broadcast %cst_32 : f32 to vector<32x128xf32>
    %102 = arith.cmpf ogt, %100, %101 : vector<32x128xf32>
    %cst_33 = arith.constant 0.000000e+00 : f32
    %103 = vector.broadcast %cst_33 : f32 to vector<32x128xf32>
    %104 = arith.minimumf %100, %103 : vector<32x128xf32>
    %105 = math.exp %104 : vector<32x128xf32>
    %cst_34 = arith.constant 1.000000e+00 : f32
    %106 = vector.broadcast %cst_34 : f32 to vector<32x128xf32>
    %107 = arith.subf %105, %106 : vector<32x128xf32>
    %108 = arith.select %102, %100, %107 : vector<32x128xi1>, vector<32x128xf32>
    %c0_35 = arith.constant 0 : index
    %c0_36 = arith.constant 0 : index
    %109 = vector.load %arg4[%c0_35, %c0_36] : memref<32x256xf32, #tpu.memory_space<vmem>>, vector<32x128xf32>
    tpu.vector_store %arg4[%c0_35, %c0_36], %108 {strides = array<i32>} : memref<32x256xf32, #tpu.memory_space<vmem>>, vector<32x128xf32>,
    %110 = vector.extract_strided_slice %21 {offsets = [1, 0], sizes = [1, 128], strides = [1, 1]} : vector<2x128xf32> to vector<1x128xf32>
    %111 = vector.extract_strided_slice %22 {offsets = [1, 0], sizes = [1, 128], strides = [1, 1]} : vector<2x128xf32> to vector<1x128xf32>
    %112 = vector.extract_strided_slice %41 {offsets = [1, 0], sizes = [1, 128], strides = [1, 1]} : vector<2x128xf32> to vector<1x128xf32>
    %113 = vector.extract_strided_slice %42 {offsets = [1, 0], sizes = [1, 128], strides = [1, 1]} : vector<2x128xf32> to vector<1x128xf32>
    %114 = vector.extract_strided_slice %61 {offsets = [1, 0], sizes = [1, 128], strides = [1, 1]} : vector<2x128xf32> to vector<1x128xf32>
    %115 = vector.extract_strided_slice %62 {offsets = [1, 0], sizes = [1, 128], strides = [1, 1]} : vector<2x128xf32> to vector<1x128xf32>
    %116 = vector.extract_strided_slice %81 {offsets = [1, 0], sizes = [1, 128], strides = [1, 1]} : vector<2x128xf32> to vector<1x128xf32>
    %117 = vector.extract_strided_slice %82 {offsets = [1, 0], sizes = [1, 128], strides = [1, 1]} : vector<2x128xf32> to vector<1x128xf32>
    %118 = vector.extract_strided_slice %86 {offsets = [1, 0], sizes = [1, 128], strides = [1, 1]} : vector<2x128xf32> to vector<1x128xf32>
    %119 = tpu.concatenate %110, %111, %112, %113, %114, %115, %116, %117, %118, %87 in 0 : vector<1x128xf32>, vector<1x128xf32>, vector<1x128xf32>, vector<1x128xf32>, vector<1x128xf32>, vector<1x128xf32>, vector<1x128xf32>, vector<1x128xf32>, vector<1x128xf32>, vector<7x128xf32> -> vector<16x128xf32>
    %cst_37 = arith.constant dense<0.000000e+00> : vector<32x128xf32>
    %120 = tpu.matmul %1, %119, %cst_37 {dimension_numbers = #tpu.dot_dimension_numbers<[1], [0], [0], [1], [0, 0, 1, 1], [], []>} : vector<32x16xf32>, vector<16x128xf32>, vector<32x128xf32> -> vector<32x128xf32>
    %121 = vector.broadcast %2 : vector<32x1xf32> to vector<32x128xf32>
    %122 = arith.addf %120, %121 : vector<32x128xf32>
    %cst_38 = arith.constant 0.000000e+00 : f32
    %123 = vector.broadcast %cst_38 : f32 to vector<32x128xf32>
    %124 = arith.cmpf ogt, %122, %123 : vector<32x128xf32>
    %cst_39 = arith.constant 0.000000e+00 : f32
    %125 = vector.broadcast %cst_39 : f32 to vector<32x128xf32>
    %126 = arith.minimumf %122, %125 : vector<32x128xf32>
    %127 = math.exp %126 : vector<32x128xf32>
    %cst_40 = arith.constant 1.000000e+00 : f32
    %128 = vector.broadcast %cst_40 : f32 to vector<32x128xf32>
    %129 = arith.subf %127, %128 : vector<32x128xf32>
    %130 = arith.select %124, %122, %129 : vector<32x128xi1>, vector<32x128xf32>
    %c0_41 = arith.constant 0 : index
    %c128 = arith.constant 128 : index
    %131 = vector.load %arg4[%c0_41, %c128] : memref<32x256xf32, #tpu.memory_space<vmem>>, vector<32x128xf32>
    tpu.vector_store %arg4[%c0_41, %c128], %130 {strides = array<i32>} : memref<32x256xf32, #tpu.memory_space<vmem>>, vector<32x128xf32>,
    return
  }
  func.func @transform_0(%arg0: i32) -> (i32, i32) {
    %c0_i32 = arith.constant 0 : i32
    %c0_i32_0 = arith.constant 0 : i32
    return %arg0, %c0_i32 : i32, i32
  }
  func.func @transform_1(%arg0: i32) -> (i32, i32) {
    %c0_i32 = arith.constant 0 : i32
    %c0_i32_0 = arith.constant 0 : i32
    %c0_i32_1 = arith.constant 0 : i32
    return %c0_i32, %c0_i32_0 : i32, i32
  }
  func.func @transform_2(%arg0: i32) -> (i32, i32) {
    %c0_i32 = arith.constant 0 : i32
    %c0_i32_0 = arith.constant 0 : i32
    %c0_i32_1 = arith.constant 0 : i32
    return %c0_i32, %c0_i32_0 : i32, i32
  }
  func.func @transform_3(%arg0: i32) -> (i32, i32) {
    %c0_i32 = arith.constant 0 : i32
    %c0_i32_0 = arith.constant 0 : i32
    return %c0_i32, %arg0 : i32, i32
  }
}

</mosaic_0001>

<llo_original>
// kernel: tpu_custom_call.1
$region0: #{tpu_custom_call.1}
  #allocation0 [shape = 'u32[]', space=smem, size = 0x4, offset = 0x4, fixed_abs, tag = 'smem constant byte address 0x4 - core index']
  #allocation1 [shape = 'u32[144,128]{1,0:T(1,128)}', space=vmem, size = 0x12000, scoped, tag = 'internal scratch']
  %s0 = inlined_call_operand.vmem [shape: f32[2,128], index: 0, kind: input, shape index: {}]
  %s1 = inlined_call_operand.vmem [shape: f32[32,16], index: 1, kind: input, shape index: {}]
  %s2 = inlined_call_operand.vmem [shape: f32[32,1], index: 2, kind: input, shape index: {}]
  %s3 = inlined_call_operand.hbm [shape: f32[32,256], index: 3, kind: output, shape index: {}]
  %s4 = sld [smem:[#allocation0]]
  $region22: #{tpu_custom_call.1} parent=0
    _
  %s6 = ssub.s32 1, %s4
  %s7 = scalar_select 0, %s6, %s4
  $region1: #{tpu_custom_call.1} parent=0
    #allocation2 [shape = 'u8[32768]{0}', space=vmem, size = 0x8000, scoped, tag = 'output window, operand 0, single buffered']
    #allocation3 [shape = 's32[1]{0}', space=sflag, size = 0x4, scoped, tag = 'scoped memory for tpu_custom_call.1']
    %8 = vsyncpa [#allocation3], 0
    // Predicated region
    $region2: #{tpu_custom_call.1} parent=1 // pred_check
      _
    $region3: #{tpu_custom_call.1} parent=1 // pred_check_branch
      %10 = sbr.rel (0) target = $region5
    $region4: #{tpu_custom_call.1} parent=1 // pred_region
      _
    $region5: #{tpu_custom_call.1} parent=1 // pred_fallthru
      _
    // Predicated region
    $region6: #{tpu_custom_call.1} parent=1 // pred_check
      _
    $region7: #{tpu_custom_call.1} parent=1 // pred_check_branch
      %12 = sbr.rel (0) target = $region9
    $region8: #{tpu_custom_call.1} parent=1 // pred_region
      _
    $region9: #{tpu_custom_call.1} parent=1 // pred_fallthru
      _
    // Predicated region
    $region10: #{tpu_custom_call.1} parent=1 // pred_check
      _
    $region11: #{tpu_custom_call.1} parent=1 // pred_check_branch
      %14 = sbr.rel (0) target = $region13
    $region12: #{tpu_custom_call.1} parent=1 // pred_region
      _
    $region13: #{tpu_custom_call.1} parent=1 // pred_fallthru
      _
    %v15 = vld [vmem:[%s0] sm:$0x3]
    %v16 = vld [vmem:[%s1] sm:$0xff]
    %v17 = vld [vmem:[%s1 + $0x8] sm:$0xff]
    %v18 = vld [vmem:[%s1 + $0x10] sm:$0xff]
    %v19 = vld [vmem:[%s1 + $0x18] sm:$0xff]
    %v20 = vld [vmem:[%s2] sm:$0xff]
    %v21 = vld [vmem:[%s2 + $0x8] sm:$0xff]
    %v22 = vld [vmem:[%s2 + $0x10] sm:$0xff]
    %v23 = vld [vmem:[%s2 + $0x18] sm:$0xff]
    %v24 = vand.u32 2147483647, %v15
    %v25 = vrcp.pop 86400.0
    %v26 = vmul.f32 %v24, %v25
    %v27 = vfloor.f32 %v26
    %v28 = vmul.f32 %v27, 86400.0
    %v29 = vsub.f32 %v24, %v28
    %vm30 = vcmp.eq.f32.partialorder %v29, 86400.0
    %v31 = vsel %vm30, 0.0, %v29
    %v32 = vand.u32 2147483647, %v31
    %v33 = vand.u32 %v15, 2147483648
    %v34 = vor.u32 %v32, %v33
    %vm35 = vcmp.ne.f32.partialorder %v34, 0.0
    %vm36 = vcmp.lt.f32.partialorder %v34, 0.0
    %vm37 = vmand %vm36, %vm35
    %v38 = vadd.f32 %v34, 86400.0
    %v39 = vsel %vm37, %v38, %v34
    %v40 = vsub.f32 %v39, 43200.0
    %v41 = vmul.f32 %v40, 3.6361027e-05
    %v42 = vand.u32 2147483647, %v41
    %vm43 = vcmp.le.f32.partialorder %v42, 0.7853982
    %vm44 = vcmp.lt.s32.totalorder %v41, 0
    %v45 = vand.u32 %v41, 2139095040
    %v46 = vshrl.u32 %v45, 23
    %v47 = vsub.s32 %v46, 127
    %v48 = vand.u32 2147483647, %v41
    %v49 = vand.u32 %v48, 8388607
    %v50 = vor.u32 %v49, 8388608
    %v51 = vsub.s32 0, %v50
    %v52 = vadd.s32 %v47, 1
    %vm53 = vcmp.gt.s32.totalorder %v52, 0
    %v54 = vsel %vm53, %v52, 0
    %v55 = vshrl.u32 %v54, 5
    %v56 = vand.u32 %v54, 31
    %v57 = vsub.s32 32, %v56
    %v58 = vshrl.u32 683565275, %v57
    %v59 = vshll.u32 683565275, %v56
    %v60 = vshrl.u32 2475754826, %v57
    %v61 = vor.u32 %v59, %v60
    %v62 = vshll.u32 2475754826, %v56
    %v63 = vshrl.u32 2131351028, %v57
    %v64 = vor.u32 %v62, %v63
    %v65 = vshll.u32 2131351028, %v56
    %v66 = vshrl.u32 2102212464, %v57
    %v67 = vor.u32 %v65, %v66
    %v68 = vshll.u32 2102212464, %v56
    %v69 = vshrl.u32 920167782, %v57
    %v70 = vor.u32 %v68, %v69
    %v71 = vshll.u32 920167782, %v56
    %v72 = vshrl.u32 1326507024, %v57
    %v73 = vor.u32 %v71, %v72
    %vm74 = vcmp.lt.s32.totalorder %v55, 1
    %vm75 = vcmp.lt.s32.totalorder %v55, 2
    %vm76 = vcmp.lt.s32.totalorder %v55, 3
    %vm77 = vcmp.lt.s32.totalorder %v55, 4
    %v78 = vsel %vm74, %v58, %v61
    %v79 = vsel %vm77, %v67, 2102212464
    %v80 = vsel %vm76, %v64, %v79
    %v81 = vsel %vm75, %v78, %v80
    %v82 = vsel %vm74, %v61, %v64
    %v83 = vsel %vm77, %v70, 920167782
    %v84 = vsel %vm76, %v67, %v83
    %v85 = vsel %vm75, %v82, %v84
    %v86 = vsel %vm74, %v64, %v67
    %v87 = vsel %vm77, %v73, 1326507024
    %v88 = vsel %vm76, %v70, %v87
    %v89 = vsel %vm75, %v86, %v88
    %v90 = vshll.u32 %v50, 8
    %v91 = vmul.u32.u64.compose %v90, %v89
    %v92 = vextract.low.u32 %v91
    %v93 = vextract.high.u32 %v91
    %v94 = vmul.u32.u64.compose %v90, %v85
    %v95 = vextract.low.u32 %v94
    %v96 = vextract.high.u32 %v94
    %v97 = vmul.u32 %v90, %v81
    %v98 = vadd.s32 %v93, %v95
    %vm99 = vc.u32 %v93, %v95
    %v100 = vadd.s32 %v96, 1
    %v101 = vsel %vm99, %v100, %v96
    %v102 = vadd.s32 %v97, %v101
    %v103 = vadd.s32 %v102, 536870912
    %v104 = vshrl.u32 %v103, 30
    %v105 = vshll.u32 %v104, 30
    %v106 = vsub.s32 %v102, %v105
    %vm107 = vcmp.lt.s32.totalorder %v106, 0
    %v108 = vsub.s32 0, %v106
    %v109 = vsel %vm107, %v108, %v106
    %v110 = vclz %v109
    %v111 = vsub.s32 %v110, 2
    %vm112 = vcmp.gt.s32.totalorder 0, %v111
    %v113 = vsel %vm112, 0, %v111
    %v114 = vsub.s32 32, %v113
    %v115 = vshll.u32 %v106, %v113
    %v116 = vshrl.u32 %v98, %v114
    %v117 = vor.u32 %v115, %v116
    %v118 = vsub.s32 4294967266, %v113
    %v119 = vadd.s32 %v118, 127
    %v120 = vshll.u32 %v119, 23
    %v121 = vor.u32 4788187, %v120
    %v122 = vand.u32 2147483647, %v121
    %v124 = vcvt.s32.f32 %v117
    %v125 = vmul.f32 %v124, %v122
    %v126 = vxor.u32 %v125, 2147483648
    %v127 = vsel %vm44, %v126, %v125
    %v128 = vsub.s32 4, %v104
    %v129 = vsel %vm44, %v128, %v104
    %v130 = vsel %vm43, %v41, %v127
    %v131 = vsel %vm43, 0, %v129
    %v132 = vcosq.f32.pop %v130
    %v133 = vsinq.f32.pop %v130
    %vm134 = vweird.f32 %v41
    %v135 = vadd.s32 %v131, 3
    %v136 = vand.u32 %v135, 3
    %vm137 = vcmp.lt.s32.totalorder %v136, 2
    %vm138 = vcmp.eq.s32.totalorder %v136, 0
    %v139 = vxor.u32 %v133, 2147483648
    %v140 = vsel %vm138, %v132, %v139
    %vm141 = vcmp.eq.s32.totalorder %v136, 2
    %v142 = vxor.u32 %v132, 2147483648
    %v143 = vsel %vm141, %v142, %v133
    %v144 = vsel %vm137, %v140, %v143
    %v145 = vsel %vm134, nan, %v144
    %v146 = vand.u32 2147483647, %v41
    %vm147 = vcmp.le.f32.partialorder %v146, 0.7853982
    %vm148 = vcmp.lt.s32.totalorder %v41, 0
    %v149 = vand.u32 %v41, 2139095040
    %v150 = vshrl.u32 %v149, 23
    %v151 = vsub.s32 %v150, 127
    %v152 = vand.u32 2147483647, %v41
    %v153 = vand.u32 %v152, 8388607
    %v154 = vor.u32 %v153, 8388608
    %v155 = vsub.s32 0, %v154
    %v156 = vadd.s32 %v151, 1
    %vm157 = vcmp.gt.s32.totalorder %v156, 0
    %v158 = vsel %vm157, %v156, 0
    %v159 = vshrl.u32 %v158, 5
    %v160 = vand.u32 %v158, 31
    %v161 = vsub.s32 32, %v160
    %v162 = vshrl.u32 683565275, %v161
    %v163 = vshll.u32 683565275, %v160
    %v164 = vshrl.u32 2475754826, %v161
    %v165 = vor.u32 %v163, %v164
    %v166 = vshll.u32 2475754826, %v160
    %v167 = vshrl.u32 2131351028, %v161
    %v168 = vor.u32 %v166, %v167
    %v169 = vshll.u32 2131351028, %v160
    %v170 = vshrl.u32 2102212464, %v161
    %v171 = vor.u32 %v169, %v170
    %v172 = vshll.u32 2102212464, %v160
    %v173 = vshrl.u32 920167782, %v161
    %v174 = vor.u32 %v172, %v173
    %v175 = vshll.u32 920167782, %v160
    %v176 = vshrl.u32 1326507024, %v161
    %v177 = vor.u32 %v175, %v176
    %vm178 = vcmp.lt.s32.totalorder %v159, 1
    %vm179 = vcmp.lt.s32.totalorder %v159, 2
    %vm180 = vcmp.lt.s32.totalorder %v159, 3
    %vm181 = vcmp.lt.s32.totalorder %v159, 4
    %v182 = vsel %vm178, %v162, %v165
    %v183 = vsel %vm181, %v171, 2102212464
    %v184 = vsel %vm180, %v168, %v183
    %v185 = vsel %vm179, %v182, %v184
    %v186 = vsel %vm178, %v165, %v168
    %v187 = vsel %vm181, %v174, 920167782
    %v188 = vsel %vm180, %v171, %v187
    %v189 = vsel %vm179, %v186, %v188
    %v190 = vsel %vm178, %v168, %v171
    %v191 = vsel %vm181, %v177, 1326507024
    %v192 = vsel %vm180, %v174, %v191
    %v193 = vsel %vm179, %v190, %v192
    %v194 = vshll.u32 %v154, 8
    %v195 = vmul.u32.u64.compose %v194, %v193
    %v196 = vextract.low.u32 %v195
    %v197 = vextract.high.u32 %v195
    %v198 = vmul.u32.u64.compose %v194, %v189
    %v199 = vextract.low.u32 %v198
    %v200 = vextract.high.u32 %v198
    %v201 = vmul.u32 %v194, %v185
    %v202 = vadd.s32 %v197, %v199
    %vm203 = vc.u32 %v197, %v199
    %v204 = vadd.s32 %v200, 1
    %v205 = vsel %vm203, %v204, %v200
    %v206 = vadd.s32 %v201, %v205
    %v207 = vadd.s32 %v206, 536870912
    %v208 = vshrl.u32 %v207, 30
    %v209 = vshll.u32 %v208, 30
    %v210 = vsub.s32 %v206, %v209
    %vm211 = vcmp.lt.s32.totalorder %v210, 0
    %v212 = vsub.s32 0, %v210
    %v213 = vsel %vm211, %v212, %v210
    %v214 = vclz %v213
    %v215 = vsub.s32 %v214, 2
    %vm216 = vcmp.gt.s32.totalorder 0, %v215
    %v217 = vsel %vm216, 0, %v215
    %v218 = vsub.s32 32, %v217
    %v219 = vshll.u32 %v210, %v217
    %v220 = vshrl.u32 %v202, %v218
    %v221 = vor.u32 %v219, %v220
    %v222 = vsub.s32 4294967266, %v217
    %v223 = vadd.s32 %v222, 127
    %v224 = vshll.u32 %v223, 23
    %v225 = vor.u32 4788187, %v224
    %v226 = vand.u32 2147483647, %v225
    %v228 = vcvt.s32.f32 %v221
    %v229 = vmul.f32 %v228, %v226
    %v230 = vxor.u32 %v229, 2147483648
    %v231 = vsel %vm148, %v230, %v229
    %v232 = vsub.s32 4, %v208
    %v233 = vsel %vm148, %v232, %v208
    %v234 = vsel %vm147, %v41, %v231
    %v235 = vsel %vm147, 0, %v233
    %v236 = vcosq.f32.pop %v234
    %v237 = vsinq.f32.pop %v234
    %vm238 = vweird.f32 %v41
    %v239 = vand.u32 %v235, 3
    %vm240 = vcmp.lt.s32.totalorder %v239, 2
    %vm241 = vcmp.eq.s32.totalorder %v239, 0
    %v242 = vxor.u32 %v237, 2147483648
    %v243 = vsel %vm241, %v236, %v242
    %vm244 = vcmp.eq.s32.totalorder %v239, 2
    %v245 = vxor.u32 %v236, 2147483648
    %v246 = vsel %vm244, %v245, %v237
    %v247 = vsel %vm240, %v243, %v246
    %v248 = vsel %vm238, nan, %v247
    %v249 = vand.u32 2147483647, %v15
    %v250 = vrcp.pop 604800.0
    %v251 = vmul.f32 %v249, %v250
    %v252 = vfloor.f32 %v251
    %v253 = vmul.f32 %v252, 604800.0
    %v254 = vsub.f32 %v249, %v253
    %vm255 = vcmp.eq.f32.partialorder %v254, 604800.0
    %v256 = vsel %vm255, 0.0, %v254
    %v257 = vand.u32 2147483647, %v256
    %v258 = vand.u32 %v15, 2147483648
    %v259 = vor.u32 %v257, %v258
    %vm260 = vcmp.ne.f32.partialorder %v259, 0.0
    %vm261 = vcmp.lt.f32.partialorder %v259, 0.0
    %vm262 = vmand %vm261, %vm260
    %v263 = vadd.f32 %v259, 604800.0
    %v264 = vsel %vm262, %v263, %v259
    %v265 = vsub.f32 %v264, 302400.0
    %v266 = vmul.f32 %v265, 5.194432e-06
    %v267 = vand.u32 2147483647, %v266
    %vm268 = vcmp.le.f32.partialorder %v267, 0.7853982
    %vm269 = vcmp.lt.s32.totalorder %v266, 0
    %v270 = vand.u32 %v266, 2139095040
    %v271 = vshrl.u32 %v270, 23
    %v272 = vsub.s32 %v271, 127
    %v273 = vand.u32 2147483647, %v266
    %v274 = vand.u32 %v273, 8388607
    %v275 = vor.u32 %v274, 8388608
    %v276 = vsub.s32 0, %v275
    %v277 = vadd.s32 %v272, 1
    %vm278 = vcmp.gt.s32.totalorder %v277, 0
    %v279 = vsel %vm278, %v277, 0
    %v280 = vshrl.u32 %v279, 5
    %v281 = vand.u32 %v279, 31
    %v282 = vsub.s32 32, %v281
    %v283 = vshrl.u32 683565275, %v282
    %v284 = vshll.u32 683565275, %v281
    %v285 = vshrl.u32 2475754826, %v282
    %v286 = vor.u32 %v284, %v285
    %v287 = vshll.u32 2475754826, %v281
    %v288 = vshrl.u32 2131351028, %v282
    %v289 = vor.u32 %v287, %v288
    %v290 = vshll.u32 2131351028, %v281
    %v291 = vshrl.u32 2102212464, %v282
    %v292 = vor.u32 %v290, %v291
    %v293 = vshll.u32 2102212464, %v281
    %v294 = vshrl.u32 920167782, %v282
    %v295 = vor.u32 %v293, %v294
    %v296 = vshll.u32 920167782, %v281
    %v297 = vshrl.u32 1326507024, %v282
    %v298 = vor.u32 %v296, %v297
    %vm299 = vcmp.lt.s32.totalorder %v280, 1
    %vm300 = vcmp.lt.s32.totalorder %v280, 2
    %vm301 = vcmp.lt.s32.totalorder %v280, 3
    %vm302 = vcmp.lt.s32.totalorder %v280, 4
    %v303 = vsel %vm299, %v283, %v286
    %v304 = vsel %vm302, %v292, 2102212464
    %v305 = vsel %vm301, %v289, %v304
    %v306 = vsel %vm300, %v303, %v305
    %v307 = vsel %vm299, %v286, %v289
    %v308 = vsel %vm302, %v295, 920167782
    %v309 = vsel %vm301, %v292, %v308
    %v310 = vsel %vm300, %v307, %v309
    %v311 = vsel %vm299, %v289, %v292
    %v312 = vsel %vm302, %v298, 1326507024
    %v313 = vsel %vm301, %v295, %v312
    %v314 = vsel %vm300, %v311, %v313
    %v315 = vshll.u32 %v275, 8
    %v316 = vmul.u32.u64.compose %v315, %v314
    %v317 = vextract.low.u32 %v316
    %v318 = vextract.high.u32 %v316
    %v319 = vmul.u32.u64.compose %v315, %v310
    %v320 = vextract.low.u32 %v319
    %v321 = vextract.high.u32 %v319
    %v322 = vmul.u32 %v315, %v306
    %v323 = vadd.s32 %v318, %v320
    %vm324 = vc.u32 %v318, %v320
    %v325 = vadd.s32 %v321, 1
    %v326 = vsel %vm324, %v325, %v321
    %v327 = vadd.s32 %v322, %v326
    %v328 = vadd.s32 %v327, 536870912
    %v329 = vshrl.u32 %v328, 30
    %v330 = vshll.u32 %v329, 30
    %v331 = vsub.s32 %v327, %v330
    %vm332 = vcmp.lt.s32.totalorder %v331, 0
    %v333 = vsub.s32 0, %v331
    %v334 = vsel %vm332, %v333, %v331
    %v335 = vclz %v334
    %v336 = vsub.s32 %v335, 2
    %vm337 = vcmp.gt.s32.totalorder 0, %v336
    %v338 = vsel %vm337, 0, %v336
    %v339 = vsub.s32 32, %v338
    %v340 = vshll.u32 %v331, %v338
    %v341 = vshrl.u32 %v323, %v339
    %v342 = vor.u32 %v340, %v341
    %v343 = vsub.s32 4294967266, %v338
    %v344 = vadd.s32 %v343, 127
    %v345 = vshll.u32 %v344, 23
    %v346 = vor.u32 4788187, %v345
    %v347 = vand.u32 2147483647, %v346
    %v349 = vcvt.s32.f32 %v342
    %v350 = vmul.f32 %v349, %v347
    %v351 = vxor.u32 %v350, 2147483648
    %v352 = vsel %vm269, %v351, %v350
    %v353 = vsub.s32 4, %v329
    %v354 = vsel %vm269, %v353, %v329
    %v355 = vsel %vm268, %v266, %v352
    %v356 = vsel %vm268, 0, %v354
    %v357 = vcosq.f32.pop %v355
    %v358 = vsinq.f32.pop %v355
    %vm359 = vweird.f32 %v266
    %v360 = vadd.s32 %v356, 3
    %v361 = vand.u32 %v360, 3
    %vm362 = vcmp.lt.s32.totalorder %v361, 2
    %vm363 = vcmp.eq.s32.totalorder %v361, 0
    %v364 = vxor.u32 %v358, 2147483648
    %v365 = vsel %vm363, %v357, %v364
    %vm366 = vcmp.eq.s32.totalorder %v361, 2
    %v367 = vxor.u32 %v357, 2147483648
    %v368 = vsel %vm366, %v367, %v358
    %v369 = vsel %vm362, %v365, %v368
    %v370 = vsel %vm359, nan, %v369
    %v371 = vand.u32 2147483647, %v266
    %vm372 = vcmp.le.f32.partialorder %v371, 0.7853982
    %vm373 = vcmp.lt.s32.totalorder %v266, 0
    %v374 = vand.u32 %v266, 2139095040
    %v375 = vshrl.u32 %v374, 23
    %v376 = vsub.s32 %v375, 127
    %v377 = vand.u32 2147483647, %v266
    %v378 = vand.u32 %v377, 8388607
    %v379 = vor.u32 %v378, 8388608
    %v380 = vsub.s32 0, %v379
    %v381 = vadd.s32 %v376, 1
    %vm382 = vcmp.gt.s32.totalorder %v381, 0
    %v383 = vsel %vm382, %v381, 0
    %v384 = vshrl.u32 %v383, 5
    %v385 = vand.u32 %v383, 31
    %v386 = vsub.s32 32, %v385
    %v387 = vshrl.u32 683565275, %v386
    %v388 = vshll.u32 683565275, %v385
    %v389 = vshrl.u32 2475754826, %v386
    %v390 = vor.u32 %v388, %v389
    %v391 = vshll.u32 2475754826, %v385
    %v392 = vshrl.u32 2131351028, %v386
    %v393 = vor.u32 %v391, %v392
    %v394 = vshll.u32 2131351028, %v385
    %v395 = vshrl.u32 2102212464, %v386
    %v396 = vor.u32 %v394, %v395
    %v397 = vshll.u32 2102212464, %v385
    %v398 = vshrl.u32 920167782, %v386
    %v399 = vor.u32 %v397, %v398
    %v400 = vshll.u32 920167782, %v385
    %v401 = vshrl.u32 1326507024, %v386
    %v402 = vor.u32 %v400, %v401
    %vm403 = vcmp.lt.s32.totalorder %v384, 1
    %vm404 = vcmp.lt.s32.totalorder %v384, 2
    %vm405 = vcmp.lt.s32.totalorder %v384, 3
    %vm406 = vcmp.lt.s32.totalorder %v384, 4
    %v407 = vsel %vm403, %v387, %v390
    %v408 = vsel %vm406, %v396, 2102212464
    %v409 = vsel %vm405, %v393, %v408
    %v410 = vsel %vm404, %v407, %v409
    %v411 = vsel %vm403, %v390, %v393
    %v412 = vsel %vm406, %v399, 920167782
    %v413 = vsel %vm405, %v396, %v412
    %v414 = vsel %vm404, %v411, %v413
    %v415 = vsel %vm403, %v393, %v396
    %v416 = vsel %vm406, %v402, 1326507024
    %v417 = vsel %vm405, %v399, %v416
    %v418 = vsel %vm404, %v415, %v417
    %v419 = vshll.u32 %v379, 8
    %v420 = vmul.u32.u64.compose %v419, %v418
    %v421 = vextract.low.u32 %v420
    %v422 = vextract.high.u32 %v420
    %v423 = vmul.u32.u64.compose %v419, %v414
    %v424 = vextract.low.u32 %v423
    %v425 = vextract.high.u32 %v423
    %v426 = vmul.u32 %v419, %v410
    %v427 = vadd.s32 %v422, %v424
    %vm428 = vc.u32 %v422, %v424
    %v429 = vadd.s32 %v425, 1
    %v430 = vsel %vm428, %v429, %v425
    %v431 = vadd.s32 %v426, %v430
    %v432 = vadd.s32 %v431, 536870912
    %v433 = vshrl.u32 %v432, 30
    %v434 = vshll.u32 %v433, 30
    %v435 = vsub.s32 %v431, %v434
    %vm436 = vcmp.lt.s32.totalorder %v435, 0
    %v437 = vsub.s32 0, %v435
    %v438 = vsel %vm436, %v437, %v435
    %v439 = vclz %v438
    %v440 = vsub.s32 %v439, 2
    %vm441 = vcmp.gt.s32.totalorder 0, %v440
    %v442 = vsel %vm441, 0, %v440
    %v443 = vsub.s32 32, %v442
    %v444 = vshll.u32 %v435, %v442
    %v445 = vshrl.u32 %v427, %v443
    %v446 = vor.u32 %v444, %v445
    %v447 = vsub.s32 4294967266, %v442
    %v448 = vadd.s32 %v447, 127
    %v449 = vshll.u32 %v448, 23
    %v450 = vor.u32 4788187, %v449
    %v451 = vand.u32 2147483647, %v450
    %v453 = vcvt.s32.f32 %v446
    %v454 = vmul.f32 %v453, %v451
    %v455 = vxor.u32 %v454, 2147483648
    %v456 = vsel %vm373, %v455, %v454
    %v457 = vsub.s32 4, %v433
    %v458 = vsel %vm373, %v457, %v433
    %v459 = vsel %vm372, %v266, %v456
    %v460 = vsel %vm372, 0, %v458
    %v461 = vcosq.f32.pop %v459
    %v462 = vsinq.f32.pop %v459
    %vm463 = vweird.f32 %v266
    %v464 = vand.u32 %v460, 3
    %vm465 = vcmp.lt.s32.totalorder %v464, 2
    %vm466 = vcmp.eq.s32.totalorder %v464, 0
    %v467 = vxor.u32 %v462, 2147483648
    %v468 = vsel %vm466, %v461, %v467
    %vm469 = vcmp.eq.s32.totalorder %v464, 2
    %v470 = vxor.u32 %v461, 2147483648
    %v471 = vsel %vm469, %v470, %v462
    %v472 = vsel %vm465, %v468, %v471
    %v473 = vsel %vm463, nan, %v472
    %v474 = vand.u32 2147483647, %v15
    %v475 = vrcp.pop 2628000.0
    %v476 = vmul.f32 %v474, %v475
    %v477 = vfloor.f32 %v476
    %v478 = vmul.f32 %v477, 2628000.0
    %v479 = vsub.f32 %v474, %v478
    %vm480 = vcmp.eq.f32.partialorder %v479, 2628000.0
    %v481 = vsel %vm480, 0.0, %v479
    %v482 = vand.u32 2147483647, %v481
    %v483 = vand.u32 %v15, 2147483648
    %v484 = vor.u32 %v482, %v483
    %vm485 = vcmp.ne.f32.partialorder %v484, 0.0
    %vm486 = vcmp.lt.f32.partialorder %v484, 0.0
    %vm487 = vmand %vm486, %vm485
    %v488 = vadd.f32 %v484, 2628000.0
    %v489 = vsel %vm487, %v488, %v484
    %v490 = vsub.f32 %v489, 1314000.0
    %v491 = vmul.f32 %v490, 1.195431e-06
    %v492 = vand.u32 2147483647, %v491
    %vm493 = vcmp.le.f32.partialorder %v492, 0.7853982
    %vm494 = vcmp.lt.s32.totalorder %v491, 0
    %v495 = vand.u32 %v491, 2139095040
    %v496 = vshrl.u32 %v495, 23
    %v497 = vsub.s32 %v496, 127
    %v498 = vand.u32 2147483647, %v491
    %v499 = vand.u32 %v498, 8388607
    %v500 = vor.u32 %v499, 8388608
    %v501 = vsub.s32 0, %v500
    %v502 = vadd.s32 %v497, 1
    %vm503 = vcmp.gt.s32.totalorder %v502, 0
    %v504 = vsel %vm503, %v502, 0
    %v505 = vshrl.u32 %v504, 5
    %v506 = vand.u32 %v504, 31
    %v507 = vsub.s32 32, %v506
    %v508 = vshrl.u32 683565275, %v507
    %v509 = vshll.u32 683565275, %v506
    %v510 = vshrl.u32 2475754826, %v507
    %v511 = vor.u32 %v509, %v510
    %v512 = vshll.u32 2475754826, %v506
    %v513 = vshrl.u32 2131351028, %v507
    %v514 = vor.u32 %v512, %v513
    %v515 = vshll.u32 2131351028, %v506
    %v516 = vshrl.u32 2102212464, %v507
    %v517 = vor.u32 %v515, %v516
    %v518 = vshll.u32 2102212464, %v506
    %v519 = vshrl.u32 920167782, %v507
    %v520 = vor.u32 %v518, %v519
    %v521 = vshll.u32 920167782, %v506
    %v522 = vshrl.u32 1326507024, %v507
    %v523 = vor.u32 %v521, %v522
    %vm524 = vcmp.lt.s32.totalorder %v505, 1
    %vm525 = vcmp.lt.s32.totalorder %v505, 2
    %vm526 = vcmp.lt.s32.totalorder %v505, 3
    %vm527 = vcmp.lt.s32.totalorder %v505, 4
    %v528 = vsel %vm524, %v508, %v511
    %v529 = vsel %vm527, %v517, 2102212464
    %v530 = vsel %vm526, %v514, %v529
    %v531 = vsel %vm525, %v528, %v530
    %v532 = vsel %vm524, %v511, %v514
    %v533 = vsel %vm527, %v520, 920167782
    %v534 = vsel %vm526, %v517, %v533
    %v535 = vsel %vm525, %v532, %v534
    %v536 = vsel %vm524, %v514, %v517
    %v537 = vsel %vm527, %v523, 1326507024
    %v538 = vsel %vm526, %v520, %v537
    %v539 = vsel %vm525, %v536, %v538
    %v540 = vshll.u32 %v500, 8
    %v541 = vmul.u32.u64.compose %v540, %v539
    %v542 = vextract.low.u32 %v541
    %v543 = vextract.high.u32 %v541
    %v544 = vmul.u32.u64.compose %v540, %v535
    %v545 = vextract.low.u32 %v544
    %v546 = vextract.high.u32 %v544
    %v547 = vmul.u32 %v540, %v531
    %v548 = vadd.s32 %v543, %v545
    %vm549 = vc.u32 %v543, %v545
    %v550 = vadd.s32 %v546, 1
    %v551 = vsel %vm549, %v550, %v546
    %v552 = vadd.s32 %v547, %v551
    %v553 = vadd.s32 %v552, 536870912
    %v554 = vshrl.u32 %v553, 30
    %v555 = vshll.u32 %v554, 30
    %v556 = vsub.s32 %v552, %v555
    %vm557 = vcmp.lt.s32.totalorder %v556, 0
    %v558 = vsub.s32 0, %v556
    %v559 = vsel %vm557, %v558, %v556
    %v560 = vclz %v559
    %v561 = vsub.s32 %v560, 2
    %vm562 = vcmp.gt.s32.totalorder 0, %v561
    %v563 = vsel %vm562, 0, %v561
    %v564 = vsub.s32 32, %v563
    %v565 = vshll.u32 %v556, %v563
    %v566 = vshrl.u32 %v548, %v564
    %v567 = vor.u32 %v565, %v566
    %v568 = vsub.s32 4294967266, %v563
    %v569 = vadd.s32 %v568, 127
    %v570 = vshll.u32 %v569, 23
    %v571 = vor.u32 4788187, %v570
    %v572 = vand.u32 2147483647, %v571
    %v574 = vcvt.s32.f32 %v567
    %v575 = vmul.f32 %v574, %v572
    %v576 = vxor.u32 %v575, 2147483648
    %v577 = vsel %vm494, %v576, %v575
    %v578 = vsub.s32 4, %v554
    %v579 = vsel %vm494, %v578, %v554
    %v580 = vsel %vm493, %v491, %v577
    %v581 = vsel %vm493, 0, %v579
    %v582 = vcosq.f32.pop %v580
    %v583 = vsinq.f32.pop %v580
    %vm584 = vweird.f32 %v491
    %v585 = vadd.s32 %v581, 3
    %v586 = vand.u32 %v585, 3
    %vm587 = vcmp.lt.s32.totalorder %v586, 2
    %vm588 = vcmp.eq.s32.totalorder %v586, 0
    %v589 = vxor.u32 %v583, 2147483648
    %v590 = vsel %vm588, %v582, %v589
    %vm591 = vcmp.eq.s32.totalorder %v586, 2
    %v592 = vxor.u32 %v582, 2147483648
    %v593 = vsel %vm591, %v592, %v583
    %v594 = vsel %vm587, %v590, %v593
    %v595 = vsel %vm584, nan, %v594
    %v596 = vand.u32 2147483647, %v491
    %vm597 = vcmp.le.f32.partialorder %v596, 0.7853982
    %vm598 = vcmp.lt.s32.totalorder %v491, 0
    %v599 = vand.u32 %v491, 2139095040
    %v600 = vshrl.u32 %v599, 23
    %v601 = vsub.s32 %v600, 127
    %v602 = vand.u32 2147483647, %v491
    %v603 = vand.u32 %v602, 8388607
    %v604 = vor.u32 %v603, 8388608
    %v605 = vsub.s32 0, %v604
    %v606 = vadd.s32 %v601, 1
    %vm607 = vcmp.gt.s32.totalorder %v606, 0
    %v608 = vsel %vm607, %v606, 0
    %v609 = vshrl.u32 %v608, 5
    %v610 = vand.u32 %v608, 31
    %v611 = vsub.s32 32, %v610
    %v612 = vshrl.u32 683565275, %v611
    %v613 = vshll.u32 683565275, %v610
    %v614 = vshrl.u32 2475754826, %v611
    %v615 = vor.u32 %v613, %v614
    %v616 = vshll.u32 2475754826, %v610
    %v617 = vshrl.u32 2131351028, %v611
    %v618 = vor.u32 %v616, %v617
    %v619 = vshll.u32 2131351028, %v610
    %v620 = vshrl.u32 2102212464, %v611
    %v621 = vor.u32 %v619, %v620
    %v622 = vshll.u32 2102212464, %v610
    %v623 = vshrl.u32 920167782, %v611
    %v624 = vor.u32 %v622, %v623
    %v625 = vshll.u32 920167782, %v610
    %v626 = vshrl.u32 1326507024, %v611
    %v627 = vor.u32 %v625, %v626
    %vm628 = vcmp.lt.s32.totalorder %v609, 1
    %vm629 = vcmp.lt.s32.totalorder %v609, 2
    %vm630 = vcmp.lt.s32.totalorder %v609, 3
    %vm631 = vcmp.lt.s32.totalorder %v609, 4
    %v632 = vsel %vm628, %v612, %v615
    %v633 = vsel %vm631, %v621, 2102212464
    %v634 = vsel %vm630, %v618, %v633
    %v635 = vsel %vm629, %v632, %v634
    %v636 = vsel %vm628, %v615, %v618
    %v637 = vsel %vm631, %v624, 920167782
    %v638 = vsel %vm630, %v621, %v637
    %v639 = vsel %vm629, %v636, %v638
    %v640 = vsel %vm628, %v618, %v621
    %v641 = vsel %vm631, %v627, 1326507024
    %v642 = vsel %vm630, %v624, %v641
    %v643 = vsel %vm629, %v640, %v642
    %v644 = vshll.u32 %v604, 8
    %v645 = vmul.u32.u64.compose %v644, %v643
    %v646 = vextract.low.u32 %v645
    %v647 = vextract.high.u32 %v645
    %v648 = vmul.u32.u64.compose %v644, %v639
    %v649 = vextract.low.u32 %v648
    %v650 = vextract.high.u32 %v648
    %v651 = vmul.u32 %v644, %v635
    %v652 = vadd.s32 %v647, %v649
    %vm653 = vc.u32 %v647, %v649
    %v654 = vadd.s32 %v650, 1
    %v655 = vsel %vm653, %v654, %v650
    %v656 = vadd.s32 %v651, %v655
    %v657 = vadd.s32 %v656, 536870912
    %v658 = vshrl.u32 %v657, 30
    %v659 = vshll.u32 %v658, 30
    %v660 = vsub.s32 %v656, %v659
    %vm661 = vcmp.lt.s32.totalorder %v660, 0
    %v662 = vsub.s32 0, %v660
    %v663 = vsel %vm661, %v662, %v660
    %v664 = vclz %v663
    %v665 = vsub.s32 %v664, 2
    %vm666 = vcmp.gt.s32.totalorder 0, %v665
    %v667 = vsel %vm666, 0, %v665
    %v668 = vsub.s32 32, %v667
    %v669 = vshll.u32 %v660, %v667
    %v670 = vshrl.u32 %v652, %v668
    %v671 = vor.u32 %v669, %v670
    %v672 = vsub.s32 4294967266, %v667
    %v673 = vadd.s32 %v672, 127
    %v674 = vshll.u32 %v673, 23
    %v675 = vor.u32 4788187, %v674
    %v676 = vand.u32 2147483647, %v675
    %v678 = vcvt.s32.f32 %v671
    %v679 = vmul.f32 %v678, %v676
    %v680 = vxor.u32 %v679, 2147483648
    %v681 = vsel %vm598, %v680, %v679
    %v682 = vsub.s32 4, %v658
    %v683 = vsel %vm598, %v682, %v658
    %v684 = vsel %vm597, %v491, %v681
    %v685 = vsel %vm597, 0, %v683
    %v686 = vcosq.f32.pop %v684
    %v687 = vsinq.f32.pop %v684
    %vm688 = vweird.f32 %v491
    %v689 = vand.u32 %v685, 3
    %vm690 = vcmp.lt.s32.totalorder %v689, 2
    %vm691 = vcmp.eq.s32.totalorder %v689, 0
    %v692 = vxor.u32 %v687, 2147483648
    %v693 = vsel %vm691, %v686, %v692
    %vm694 = vcmp.eq.s32.totalorder %v689, 2
    %v695 = vxor.u32 %v686, 2147483648
    %v696 = vsel %vm694, %v695, %v687
    %v697 = vsel %vm690, %v693, %v696
    %v698 = vsel %vm688, nan, %v697
    %v699 = vand.u32 2147483647, %v15
    %v700 = vrcp.pop 31536000.0
    %v701 = vmul.f32 %v699, %v700
    %v702 = vfloor.f32 %v701
    %v703 = vmul.f32 %v702, 31536000.0
    %v704 = vsub.f32 %v699, %v703
    %vm705 = vcmp.eq.f32.partialorder %v704, 31536000.0
    %v706 = vsel %vm705, 0.0, %v704
    %v707 = vand.u32 2147483647, %v706
    %v708 = vand.u32 %v15, 2147483648
    %v709 = vor.u32 %v707, %v708
    %vm710 = vcmp.ne.f32.partialorder %v709, 0.0
    %vm711 = vcmp.lt.f32.partialorder %v709, 0.0
    %vm712 = vmand %vm711, %vm710
    %v713 = vadd.f32 %v709, 31536000.0
    %v714 = vsel %vm712, %v713, %v709
    %v715 = vsub.f32 %v714, 15768000.0
    %v716 = vmul.f32 %v715, 9.961925e-08
    %v717 = vand.u32 2147483647, %v716
    %vm718 = vcmp.le.f32.partialorder %v717, 0.7853982
    %vm719 = vcmp.lt.s32.totalorder %v716, 0
    %v720 = vand.u32 %v716, 2139095040
    %v721 = vshrl.u32 %v720, 23
    %v722 = vsub.s32 %v721, 127
    %v723 = vand.u32 2147483647, %v716
    %v724 = vand.u32 %v723, 8388607
    %v725 = vor.u32 %v724, 8388608
    %v726 = vsub.s32 0, %v725
    %v727 = vadd.s32 %v722, 1
    %vm728 = vcmp.gt.s32.totalorder %v727, 0
    %v729 = vsel %vm728, %v727, 0
    %v730 = vshrl.u32 %v729, 5
    %v731 = vand.u32 %v729, 31
    %v732 = vsub.s32 32, %v731
    %v733 = vshrl.u32 683565275, %v732
    %v734 = vshll.u32 683565275, %v731
    %v735 = vshrl.u32 2475754826, %v732
    %v736 = vor.u32 %v734, %v735
    %v737 = vshll.u32 2475754826, %v731
    %v738 = vshrl.u32 2131351028, %v732
    %v739 = vor.u32 %v737, %v738
    %v740 = vshll.u32 2131351028, %v731
    %v741 = vshrl.u32 2102212464, %v732
    %v742 = vor.u32 %v740, %v741
    %v743 = vshll.u32 2102212464, %v731
    %v744 = vshrl.u32 920167782, %v732
    %v745 = vor.u32 %v743, %v744
    %v746 = vshll.u32 920167782, %v731
    %v747 = vshrl.u32 1326507024, %v732
    %v748 = vor.u32 %v746, %v747
    %vm749 = vcmp.lt.s32.totalorder %v730, 1
    %vm750 = vcmp.lt.s32.totalorder %v730, 2
    %vm751 = vcmp.lt.s32.totalorder %v730, 3
    %vm752 = vcmp.lt.s32.totalorder %v730, 4
    %v753 = vsel %vm749, %v733, %v736
    %v754 = vsel %vm752, %v742, 2102212464
    %v755 = vsel %vm751, %v739, %v754
    %v756 = vsel %vm750, %v753, %v755
    %v757 = vsel %vm749, %v736, %v739
    %v758 = vsel %vm752, %v745, 920167782
    %v759 = vsel %vm751, %v742, %v758
    %v760 = vsel %vm750, %v757, %v759
    %v761 = vsel %vm749, %v739, %v742
    %v762 = vsel %vm752, %v748, 1326507024
    %v763 = vsel %vm751, %v745, %v762
    %v764 = vsel %vm750, %v761, %v763
    %v765 = vshll.u32 %v725, 8
    %v766 = vmul.u32.u64.compose %v765, %v764
    %v767 = vextract.low.u32 %v766
    %v768 = vextract.high.u32 %v766
    %v769 = vmul.u32.u64.compose %v765, %v760
    %v770 = vextract.low.u32 %v769
    %v771 = vextract.high.u32 %v769
    %v772 = vmul.u32 %v765, %v756
    %v773 = vadd.s32 %v768, %v770
    %vm774 = vc.u32 %v768, %v770
    %v775 = vadd.s32 %v771, 1
    %v776 = vsel %vm774, %v775, %v771
    %v777 = vadd.s32 %v772, %v776
    %v778 = vadd.s32 %v777, 536870912
    %v779 = vshrl.u32 %v778, 30
    %v780 = vshll.u32 %v779, 30
    %v781 = vsub.s32 %v777, %v780
    %vm782 = vcmp.lt.s32.totalorder %v781, 0
    %v783 = vsub.s32 0, %v781
    %v784 = vsel %vm782, %v783, %v781
    %v785 = vclz %v784
    %v786 = vsub.s32 %v785, 2
    %vm787 = vcmp.gt.s32.totalorder 0, %v786
    %v788 = vsel %vm787, 0, %v786
    %v789 = vsub.s32 32, %v788
    %v790 = vshll.u32 %v781, %v788
    %v791 = vshrl.u32 %v773, %v789
    %v792 = vor.u32 %v790, %v791
    %v793 = vsub.s32 4294967266, %v788
    %v794 = vadd.s32 %v793, 127
    %v795 = vshll.u32 %v794, 23
    %v796 = vor.u32 4788187, %v795
    %v797 = vand.u32 2147483647, %v796
    %v799 = vcvt.s32.f32 %v792
    %v800 = vmul.f32 %v799, %v797
    %v801 = vxor.u32 %v800, 2147483648
    %v802 = vsel %vm719, %v801, %v800
    %v803 = vsub.s32 4, %v779
    %v804 = vsel %vm719, %v803, %v779
    %v805 = vsel %vm718, %v716, %v802
    %v806 = vsel %vm718, 0, %v804
    %v807 = vcosq.f32.pop %v805
    %v808 = vsinq.f32.pop %v805
    %vm809 = vweird.f32 %v716
    %v810 = vadd.s32 %v806, 3
    %v811 = vand.u32 %v810, 3
    %vm812 = vcmp.lt.s32.totalorder %v811, 2
    %vm813 = vcmp.eq.s32.totalorder %v811, 0
    %v814 = vxor.u32 %v808, 2147483648
    %v815 = vsel %vm813, %v807, %v814
    %vm816 = vcmp.eq.s32.totalorder %v811, 2
    %v817 = vxor.u32 %v807, 2147483648
    %v818 = vsel %vm816, %v817, %v808
    %v819 = vsel %vm812, %v815, %v818
    %v820 = vsel %vm809, nan, %v819
    %v821 = vand.u32 2147483647, %v716
    %vm822 = vcmp.le.f32.partialorder %v821, 0.7853982
    %vm823 = vcmp.lt.s32.totalorder %v716, 0
    %v824 = vand.u32 %v716, 2139095040
    %v825 = vshrl.u32 %v824, 23
    %v826 = vsub.s32 %v825, 127
    %v827 = vand.u32 2147483647, %v716
    %v828 = vand.u32 %v827, 8388607
    %v829 = vor.u32 %v828, 8388608
    %v830 = vsub.s32 0, %v829
    %v831 = vadd.s32 %v826, 1
    %vm832 = vcmp.gt.s32.totalorder %v831, 0
    %v833 = vsel %vm832, %v831, 0
    %v834 = vshrl.u32 %v833, 5
    %v835 = vand.u32 %v833, 31
    %v836 = vsub.s32 32, %v835
    %v837 = vshrl.u32 683565275, %v836
    %v838 = vshll.u32 683565275, %v835
    %v839 = vshrl.u32 2475754826, %v836
    %v840 = vor.u32 %v838, %v839
    %v841 = vshll.u32 2475754826, %v835
    %v842 = vshrl.u32 2131351028, %v836
    %v843 = vor.u32 %v841, %v842
    %v844 = vshll.u32 2131351028, %v835
    %v845 = vshrl.u32 2102212464, %v836
    %v846 = vor.u32 %v844, %v845
    %v847 = vshll.u32 2102212464, %v835
    %v848 = vshrl.u32 920167782, %v836
    %v849 = vor.u32 %v847, %v848
    %v850 = vshll.u32 920167782, %v835
    %v851 = vshrl.u32 1326507024, %v836
    %v852 = vor.u32 %v850, %v851
    %vm853 = vcmp.lt.s32.totalorder %v834, 1
    %vm854 = vcmp.lt.s32.totalorder %v834, 2
    %vm855 = vcmp.lt.s32.totalorder %v834, 3
    %vm856 = vcmp.lt.s32.totalorder %v834, 4
    %v857 = vsel %vm853, %v837, %v840
    %v858 = vsel %vm856, %v846, 2102212464
    %v859 = vsel %vm855, %v843, %v858
    %v860 = vsel %vm854, %v857, %v859
    %v861 = vsel %vm853, %v840, %v843
    %v862 = vsel %vm856, %v849, 920167782
    %v863 = vsel %vm855, %v846, %v862
    %v864 = vsel %vm854, %v861, %v863
    %v865 = vsel %vm853, %v843, %v846
    %v866 = vsel %vm856, %v852, 1326507024
    %v867 = vsel %vm855, %v849, %v866
    %v868 = vsel %vm854, %v865, %v867
    %v869 = vshll.u32 %v829, 8
    %v870 = vmul.u32.u64.compose %v869, %v868
    %v871 = vextract.low.u32 %v870
    %v872 = vextract.high.u32 %v870
    %v873 = vmul.u32.u64.compose %v869, %v864
    %v874 = vextract.low.u32 %v873
    %v875 = vextract.high.u32 %v873
    %v876 = vmul.u32 %v869, %v860
    %v877 = vadd.s32 %v872, %v874
    %vm878 = vc.u32 %v872, %v874
    %v879 = vadd.s32 %v875, 1
    %v880 = vsel %vm878, %v879, %v875
    %v881 = vadd.s32 %v876, %v880
    %v882 = vadd.s32 %v881, 536870912
    %v883 = vshrl.u32 %v882, 30
    %v884 = vshll.u32 %v883, 30
    %v885 = vsub.s32 %v881, %v884
    %vm886 = vcmp.lt.s32.totalorder %v885, 0
    %v887 = vsub.s32 0, %v885
    %v888 = vsel %vm886, %v887, %v885
    %v889 = vclz %v888
    %v890 = vsub.s32 %v889, 2
    %vm891 = vcmp.gt.s32.totalorder 0, %v890
    %v892 = vsel %vm891, 0, %v890
    %v893 = vsub.s32 32, %v892
    %v894 = vshll.u32 %v885, %v892
    %v895 = vshrl.u32 %v877, %v893
    %v896 = vor.u32 %v894, %v895
    %v897 = vsub.s32 4294967266, %v892
    %v898 = vadd.s32 %v897, 127
    %v899 = vshll.u32 %v898, 23
    %v900 = vor.u32 4788187, %v899
    %v901 = vand.u32 2147483647, %v900
    %v903 = vcvt.s32.f32 %v896
    %v904 = vmul.f32 %v903, %v901
    %v905 = vxor.u32 %v904, 2147483648
    %v906 = vsel %vm823, %v905, %v904
    %v907 = vsub.s32 4, %v883
    %v908 = vsel %vm823, %v907, %v883
    %v909 = vsel %vm822, %v716, %v906
    %v910 = vsel %vm822, 0, %v908
    %v911 = vcosq.f32.pop %v909
    %v912 = vsinq.f32.pop %v909
    %vm913 = vweird.f32 %v716
    %v914 = vand.u32 %v910, 3
    %vm915 = vcmp.lt.s32.totalorder %v914, 2
    %vm916 = vcmp.eq.s32.totalorder %v914, 0
    %v917 = vxor.u32 %v912, 2147483648
    %v918 = vsel %vm916, %v911, %v917
    %vm919 = vcmp.eq.s32.totalorder %v914, 2
    %v920 = vxor.u32 %v911, 2147483648
    %v921 = vsel %vm919, %v920, %v912
    %v922 = vsel %vm915, %v918, %v921
    %v923 = vsel %vm913, nan, %v922
    %v924 = vsub.f32 %v15, 15768000.0
    %v925 = vmul.f32 %v924, 9.961925e-08
    %v927 = vrot.slane %v248, 7
    %v930 = vrot.slane %v370, 6
    %v933 = vrot.slane %v473, 5
    %v936 = vrot.slane %v595, 4
    %v939 = vrot.slane %v698, 3
    %v942 = vrot.slane %v820, 2
    %v945 = vrot.slane %v923, 1
    %vm947 = vcmask 1040384
    %v948 = vsel %vm947, %v145, %v927
    %vm949 = vcmask 1041408
    %v950 = vsel %vm949, %v948, %v930
    %vm951 = vcmask 1042432
    %v952 = vsel %vm951, %v950, %v933
    %vm953 = vcmask 1043456
    %v954 = vsel %vm953, %v952, %v936
    %vm955 = vcmask 1044480
    %v956 = vsel %vm955, %v954, %v939
    %vm957 = vcmask 1045504
    %v958 = vsel %vm957, %v956, %v942
    %vm959 = vcmask 1046528
    %v960 = vsel %vm959, %v958, %v945
    %v961 = vsel %vm947, %v925, 0.0
    %963 = vset.pattern.permute.xlu0 0
    %964 = vperm.xlu0 %963, %v20
    %v965 = vpop.permute.xlu0 %964
    %968 = vset.pattern.permute.xlu0 0
    %969 = vperm.xlu0 %968, %v21
    %v970 = vpop.permute.xlu0 %969
    %973 = vset.pattern.permute.xlu0 0
    %974 = vperm.xlu0 %973, %v22
    %v975 = vpop.permute.xlu0 %974
    %978 = vset.pattern.permute.xlu0 0
    %979 = vperm.xlu0 %978, %v23
    %v980 = vpop.permute.xlu0 %979
    %vm982 = vcmask 130048
    %v984 = vsel %vm982, %v16, 0
    %v987 = vsel %vm982, %v17, 0
    %v990 = vsel %vm982, %v18, 0
    %v993 = vsel %vm982, %v19, 0
    %995 = vmatprep.subr.mxu0 0.0
    %996 = vmatpush1.msra.mxu0 %v960
    %997 = vmatprep.subr.mxu0 0.0
    %998 = vmatpush1.msra.mxu0 %v961
    %999 = vmatprep.subr.mxu0 0.0
    %1000 = vmatpush1.msra.mxu0 0.0
    %1001 = vmatprep.subr.mxu0 0.0
    %1002 = vmatpush1.msra.mxu0 0.0
    %1003 = vmatprep.subr.mxu0 0.0
    %1004 = vmatpush1.msra.mxu0 0.0
    %1005 = vmatprep.subr.mxu0 0.0
    %1006 = vmatpush1.msra.mxu0 0.0
    %1007 = vmatprep.subr.mxu0 0.0
    %1008 = vmatpush1.msra.mxu0 0.0
    %1009 = vmatprep.subr.mxu0 0.0
    %1010 = vmatpush1.msra.mxu0 0.0
    %1011 = vmatprep.subr.mxu0 0.0
    %1012 = vmatpush1.msra.mxu0 0.0
    %1013 = vmatprep.subr.mxu0 0.0
    %1014 = vmatpush1.msra.mxu0 0.0
    %1015 = vmatprep.subr.mxu0 0.0
    %1016 = vmatpush1.msra.mxu0 0.0
    %1017 = vmatprep.subr.mxu0 0.0
    %1018 = vmatpush1.msra.mxu0 0.0
    %1019 = vmatprep.subr.mxu0 0.0
    %1020 = vmatpush1.msra.mxu0 0.0
    %1021 = vmatprep.subr.mxu0 0.0
    %1022 = vmatpush1.msra.mxu0 0.0
    %1023 = vmatprep.subr.mxu0 0.0
    %1024 = vmatpush1.msra.mxu0 0.0
    %1025 = vmatprep.subr.mxu0 0.0
    %1026 = vmatpush1.msra.mxu0 0.0
    %1027 = vmatprep.subr.mxu0 0.0
    %1028 = vmatpush1.msra.mxu0 0.0
    %1029 = vmatprep.subr.mxu0 0.0
    %1030 = vmatpush1.msra.mxu0 0.0
    %1031 = vmatprep.subr.mxu0 0.0
    %1032 = vmatpush1.msra.mxu0 0.0
    %1033 = vmatprep.subr.mxu0 0.0
    %1034 = vmatpush1.msra.mxu0 0.0
    %1035 = vmatprep.subr.mxu0 0.0
    %1036 = vmatpush1.msra.mxu0 0.0
    %1037 = vmatprep.subr.mxu0 0.0
    %1038 = vmatpush1.msra.mxu0 0.0
    %1039 = vmatprep.subr.mxu0 0.0
    %1040 = vmatpush1.msra.mxu0 0.0
    %1041 = vmatprep.subr.mxu0 0.0
    %1042 = vmatpush1.msra.mxu0 0.0
    %1043 = vmatprep.subr.mxu0 0.0
    %1044 = vmatpush1.msra.mxu0 0.0
    %1045 = vmatprep.subr.mxu0 0.0
    %1046 = vmatpush1.msra.mxu0 0.0
    %1047 = vmatprep.subr.mxu0 0.0
    %1048 = vmatpush1.msra.mxu0 0.0
    %1049 = vmatprep.subr.mxu0 0.0
    %1050 = vmatpush1.msra.mxu0 0.0
    %1051 = vmatprep.subr.mxu0 0.0
    %1052 = vmatpush1.msra.mxu0 0.0
    %1053 = vmatprep.subr.mxu0 0.0
    %1054 = vmatpush1.msra.mxu0 0.0
    %1055 = vmatprep.subr.mxu0 0.0
    %1056 = vmatpush1.msra.mxu0 0.0
    %1057 = vmatprep.subr.mxu0 0.0
    %1058 = vmatpush1.msra.mxu0 0.0
    %1059 = vmatprep.mubr.f32.mxu0 0.0
    %1060 = vmatmul.mubr.f32.gmra.mrb[0].mxu0 %v984
    %v1061 = vpop.f32.mrb[0].mxu0
    %v1062 = vadd.f32 %v965, %v1061
    %v1063 = vpop.f32.mrb[0].mxu0
    %1064 = vmatprep.mubr.f32.mxu0 0.0
    %1065 = vmatmul.mubr.f32.gmra.mrb[0].mxu0 %v987
    %v1066 = vpop.f32.mrb[0].mxu0
    %v1067 = vadd.f32 %v970, %v1066
    %v1068 = vpop.f32.mrb[0].mxu0
    %1069 = vmatprep.mubr.f32.mxu0 0.0
    %1070 = vmatmul.mubr.f32.gmra.mrb[0].mxu0 %v990
    %v1071 = vpop.f32.mrb[0].mxu0
    %v1072 = vadd.f32 %v975, %v1071
    %v1073 = vpop.f32.mrb[0].mxu0
    %1074 = vmatprep.mubr.f32.mxu0 0.0
    %1075 = vmatmul.mubr.f32.gmra.mrb[0].mxu0 %v993
    %v1076 = vpop.f32.mrb[0].mxu0
    %v1077 = vadd.f32 %v980, %v1076
    %v1078 = vpop.f32.mrb[0].mxu0
    %1079 = vdwg.mxu0
    %vm1080 = vcmp.gt.f32.partialorder %v1062, 0.0
    %vm1081 = vcmp.gt.f32.partialorder %v1067, 0.0
    %vm1082 = vcmp.gt.f32.partialorder %v1072, 0.0
    %vm1083 = vcmp.gt.f32.partialorder %v1077, 0.0
    %v1084 = vmin.f32 %v1062, 0.0
    %v1085 = vmin.f32 %v1067, 0.0
    %v1086 = vmin.f32 %v1072, 0.0
    %v1087 = vmin.f32 %v1077, 0.0
    %v1088 = vmul.f32 %v1084, 1.442695
    %v1089 = vpow.pop %v1088
    %v1090 = vmul.f32 %v1085, 1.442695
    %v1091 = vpow.pop %v1090
    %v1092 = vmul.f32 %v1086, 1.442695
    %v1093 = vpow.pop %v1092
    %v1094 = vmul.f32 %v1087, 1.442695
    %v1095 = vpow.pop %v1094
    %v1096 = vsub.f32 %v1089, 1.0
    %v1097 = vsub.f32 %v1091, 1.0
    %v1098 = vsub.f32 %v1093, 1.0
    %v1099 = vsub.f32 %v1095, 1.0
    %v1100 = vsel %vm1080, %v1062, %v1096
    %v1101 = vsel %vm1081, %v1067, %v1097
    %v1102 = vsel %vm1082, %v1072, %v1098
    %v1103 = vsel %vm1083, %v1077, %v1099
    %1104 = vst [vmem:[#allocation2] sm:$0xff] %v1100
    %1105 = vst [vmem:[#allocation2 + $0x10] sm:$0xff] %v1101
    %1106 = vst [vmem:[#allocation2 + $0x20] sm:$0xff] %v1102
    %1107 = vst [vmem:[#allocation2 + $0x30] sm:$0xff] %v1103
    %v1109 = vrot.slane %v145, 1
    %v1111 = vrot.slane %v370, 7
    %v1113 = vrot.slane %v473, 6
    %v1115 = vrot.slane %v595, 5
    %v1117 = vrot.slane %v698, 4
    %v1119 = vrot.slane %v820, 3
    %v1121 = vrot.slane %v923, 2
    %v1124 = vrot.slane %v925, 1
    %v1126 = vsel %vm947, %v1109, %v248
    %v1127 = vsel %vm949, %v1126, %v1111
    %v1128 = vsel %vm951, %v1127, %v1113
    %v1129 = vsel %vm953, %v1128, %v1115
    %v1130 = vsel %vm955, %v1129, %v1117
    %v1131 = vsel %vm957, %v1130, %v1119
    %v1132 = vsel %vm959, %v1131, %v1121
    %v1133 = vsel %vm947, %v1124, 0.0
    %1134 = vmatprep.subr.mxu0 0.0
    %1135 = vmatpush1.msra.mxu0 %v1132
    %1136 = vmatprep.subr.mxu0 0.0
    %1137 = vmatpush1.msra.mxu0 %v1133
    %1138 = vmatprep.subr.mxu0 0.0
    %1139 = vmatpush1.msra.mxu0 0.0
    %1140 = vmatprep.subr.mxu0 0.0
    %1141 = vmatpush1.msra.mxu0 0.0
    %1142 = vmatprep.subr.mxu0 0.0
    %1143 = vmatpush1.msra.mxu0 0.0
    %1144 = vmatprep.subr.mxu0 0.0
    %1145 = vmatpush1.msra.mxu0 0.0
    %1146 = vmatprep.subr.mxu0 0.0
    %1147 = vmatpush1.msra.mxu0 0.0
    %1148 = vmatprep.subr.mxu0 0.0
    %1149 = vmatpush1.msra.mxu0 0.0
    %1150 = vmatprep.subr.mxu0 0.0
    %1151 = vmatpush1.msra.mxu0 0.0
    %1152 = vmatprep.subr.mxu0 0.0
    %1153 = vmatpush1.msra.mxu0 0.0
    %1154 = vmatprep.subr.mxu0 0.0
    %1155 = vmatpush1.msra.mxu0 0.0
    %1156 = vmatprep.subr.mxu0 0.0
    %1157 = vmatpush1.msra.mxu0 0.0
    %1158 = vmatprep.subr.mxu0 0.0
    %1159 = vmatpush1.msra.mxu0 0.0
    %1160 = vmatprep.subr.mxu0 0.0
    %1161 = vmatpush1.msra.mxu0 0.0
    %1162 = vmatprep.subr.mxu0 0.0
    %1163 = vmatpush1.msra.mxu0 0.0
    %1164 = vmatprep.subr.mxu0 0.0
    %1165 = vmatpush1.msra.mxu0 0.0
    %1166 = vmatprep.subr.mxu0 0.0
    %1167 = vmatpush1.msra.mxu0 0.0
    %1168 = vmatprep.subr.mxu0 0.0
    %1169 = vmatpush1.msra.mxu0 0.0
    %1170 = vmatprep.subr.mxu0 0.0
    %1171 = vmatpush1.msra.mxu0 0.0
    %1172 = vmatprep.subr.mxu0 0.0
    %1173 = vmatpush1.msra.mxu0 0.0
    %1174 = vmatprep.subr.mxu0 0.0
    %1175 = vmatpush1.msra.mxu0 0.0
    %1176 = vmatprep.subr.mxu0 0.0
    %1177 = vmatpush1.msra.mxu0 0.0
    %1178 = vmatprep.subr.mxu0 0.0
    %1179 = vmatpush1.msra.mxu0 0.0
    %1180 = vmatprep.subr.mxu0 0.0
    %1181 = vmatpush1.msra.mxu0 0.0
    %1182 = vmatprep.subr.mxu0 0.0
    %1183 = vmatpush1.msra.mxu0 0.0
    %1184 = vmatprep.subr.mxu0 0.0
    %1185 = vmatpush1.msra.mxu0 0.0
    %1186 = vmatprep.subr.mxu0 0.0
    %1187 = vmatpush1.msra.mxu0 0.0
    %1188 = vmatprep.subr.mxu0 0.0
    %1189 = vmatpush1.msra.mxu0 0.0
    %1190 = vmatprep.subr.mxu0 0.0
    %1191 = vmatpush1.msra.mxu0 0.0
    %1192 = vmatprep.subr.mxu0 0.0
    %1193 = vmatpush1.msra.mxu0 0.0
    %1194 = vmatprep.subr.mxu0 0.0
    %1195 = vmatpush1.msra.mxu0 0.0
    %1196 = vmatprep.subr.mxu0 0.0
    %1197 = vmatpush1.msra.mxu0 0.0
    %1198 = vmatprep.mubr.f32.mxu0 0.0
    %1199 = vmatmul.mubr.f32.gmra.mrb[0].mxu0 %v984
    %v1200 = vpop.f32.mrb[0].mxu0
    %v1201 = vadd.f32 %v965, %v1200
    %v1202 = vpop.f32.mrb[0].mxu0
    %1203 = vmatprep.mubr.f32.mxu0 0.0
    %1204 = vmatmul.mubr.f32.gmra.mrb[0].mxu0 %v987
    %v1205 = vpop.f32.mrb[0].mxu0
    %v1206 = vadd.f32 %v970, %v1205
    %v1207 = vpop.f32.mrb[0].mxu0
    %1208 = vmatprep.mubr.f32.mxu0 0.0
    %1209 = vmatmul.mubr.f32.gmra.mrb[0].mxu0 %v990
    %v1210 = vpop.f32.mrb[0].mxu0
    %v1211 = vadd.f32 %v975, %v1210
    %v1212 = vpop.f32.mrb[0].mxu0
    %1213 = vmatprep.mubr.f32.mxu0 0.0
    %1214 = vmatmul.mubr.f32.gmra.mrb[0].mxu0 %v993
    %v1215 = vpop.f32.mrb[0].mxu0
    %v1216 = vadd.f32 %v980, %v1215
    %v1217 = vpop.f32.mrb[0].mxu0
    %1218 = vdwg.mxu0
    %vm1219 = vcmp.gt.f32.partialorder %v1201, 0.0
    %vm1220 = vcmp.gt.f32.partialorder %v1206, 0.0
    %vm1221 = vcmp.gt.f32.partialorder %v1211, 0.0
    %vm1222 = vcmp.gt.f32.partialorder %v1216, 0.0
    %v1223 = vmin.f32 %v1201, 0.0
    %v1224 = vmin.f32 %v1206, 0.0
    %v1225 = vmin.f32 %v1211, 0.0
    %v1226 = vmin.f32 %v1216, 0.0
    %v1227 = vmul.f32 %v1223, 1.442695
    %v1228 = vpow.pop %v1227
    %v1229 = vmul.f32 %v1224, 1.442695
    %v1230 = vpow.pop %v1229
    %v1231 = vmul.f32 %v1225, 1.442695
    %v1232 = vpow.pop %v1231
    %v1233 = vmul.f32 %v1226, 1.442695
    %v1234 = vpow.pop %v1233
    %v1235 = vsub.f32 %v1228, 1.0
    %v1236 = vsub.f32 %v1230, 1.0
    %v1237 = vsub.f32 %v1232, 1.0
    %v1238 = vsub.f32 %v1234, 1.0
    %v1239 = vsel %vm1219, %v1201, %v1235
    %v1240 = vsel %vm1220, %v1206, %v1236
    %v1241 = vsel %vm1221, %v1211, %v1237
    %v1242 = vsel %vm1222, %v1216, %v1238
    %1243 = vst [vmem:[#allocation2 + $0x8] sm:$0xff] %v1239
    %1244 = vst [vmem:[#allocation2 + $0x18] sm:$0xff] %v1240
    %1245 = vst [vmem:[#allocation2 + $0x28] sm:$0xff] %v1241
    %1246 = vst [vmem:[#allocation2 + $0x38] sm:$0xff] %v1242
    // Predicated region
    $region14: #{tpu_custom_call.1} parent=1 // pred_check
      _
    $region15: #{tpu_custom_call.1} parent=1 // pred_check_branch
      %1248 = sbr.rel (0) target = $region17
    $region16: #{tpu_custom_call.1} parent=1 // pred_region
      %s1250 = ssub.s32 1024, 1024
      %1251 = vsyncadd [#allocation3], %s1250
      %s1252 = sshll.u32 [#allocation2], 4
      %s1253 = int_to_ptr.vmem [resolvable:$true] %s1252
      %1258 = dma.vmem_to_hbm [thread:$0]  %s1253, 1024, %s3, [#allocation3], 256, 256, 16
    $region17: #{tpu_custom_call.1} parent=1 // pred_fallthru
      _
    // Predicated region
    $region18: #{tpu_custom_call.1} parent=1 // pred_check
      _
    $region19: #{tpu_custom_call.1} parent=1 // pred_check_branch
      %1260 = sbr.rel (0) target = $region21
    $region20: #{tpu_custom_call.1} parent=1 // pred_region
      %1261 = dma.done [#allocation3], 1024
    $region21: #{tpu_custom_call.1} parent=1 // pred_fallthru
      _
    %1262 = vsyncpa [#allocation3], 1

</llo_original>
